<compile_context>
chip_gen: v6e
topology: v6e:2x2x1
jax: 0.10.0
libtpu: 0.0.40
codegen_flags: <defaults>
</compile_context>

<pallas_src>
import jax
import jax.numpy as jnp
from jax.experimental import pallas as pl
from jax.experimental.pallas import tpu as pltpu


def _convt_kernel(x_ref, w_ref, b_ref, o_ref):
    # x_ref: (1, C_in, P)     x.dtype -- P = R_h*W pixels of ONE image, row-major (h, w)
    # w_ref: (KH, C_in, TD)   bf16    -- TD output columns ordered (kw, c_out)
    # b_ref: (1, TD)          f32
    # o_ref: (1, R_h, KH, W, TD)      -- out dtype
    _, R_h, KH, W, TD = o_ref.shape
    # In-kernel NCHW -> pixel-major transpose + bf16 cast.  This replaces a full
    # input-sized HBM read+write pass in the wrapper; the XLU transpose rides a free
    # VLIW slot since the kernel saturates the store/DMA path, not the XLU.
    xp = jnp.transpose(x_ref[0], (1, 0)).astype(jnp.bfloat16)      # (P, C_in)
    bb = b_ref[...]                                                # read once (hoisted)
    for kh in range(KH):                                           # KH == 2, unrolled
        y = jnp.dot(xp, w_ref[kh], preferred_element_type=jnp.float32) + bb
        # (P, TD) -> (R_h, W, TD): cheap shape-cast in VMEM when W % 8 == 0 (a
        # relayout otherwise -- prefer 8-aligned W if you control the shapes).
        o_ref[0, :, kh, :, :] = y.reshape(R_h, W, TD).astype(o_ref.dtype)


def conv_transpose2d_pallas(x, weight, bias, kernel=2, stride=2, *,
                            tile_pixels=None, out_dtype=None, layout="NCHW"):
    """x: (N, C_in, H, W); weight: (C_in, C_out, KH, KW); bias: (C_out,).

    layout="NCHW" matches nn.ConvTranspose2d; layout="NHWC" skips the output-sized
    transpose (free reshape only).  out_dtype=jnp.bfloat16 halves HBM write traffic
    when the consumer tolerates it.
    """
    assert kernel == stride, "this kernel implements the kernel == stride, padding=0 case"
    assert layout in ("NCHW", "NHWC")
    N, C_in, H, W = x.shape
    C_in_w, C_out, KH, KW = weight.shape
    assert C_in == C_in_w and KH == kernel and KW == kernel

    D = KW * C_out                       # output columns per (pixel, kh), ordered (kw, co)
    out_dtype = x.dtype if out_dtype is None else jnp.dtype(out_dtype)

    # --- generation-aware VMEM / tile policy -----------------------------------
    try:
        vmem_cap = int(pltpu.get_tpu_info().vmem_capacity_bytes)
    except Exception:
        vmem_cap = 64 << 20              # conservative fallback (v7x-sized)
    if vmem_cap <= (64 << 20):           # v7x-class: 64 MiB / TensorCore
        vmem_ceiling = int(vmem_cap * 0.6)
        default_tile = 2048
    else:                                # v5e / v6e: 128 MiB
        vmem_ceiling = min(96 << 20, int(vmem_cap * 0.75))
        default_tile = 4096
    if tile_pixels is None:
        tile_pixels = default_tile

    # Column tile: full D when small, else 512 (multiple of 128 -> unmasked,
    # lane-dense stores and a 256-aligned MXU N dim).
    TD = D if D <= 512 else 512
    n_col = pl.cdiv(D, TD)

    def _aligned_rows(cap):
        # Largest R_h <= cap whose pixel count R_h*W is a multiple of 128 (required
        # for a partial trailing block dim); H itself (full block) is always legal.
        cap = max(1, min(cap, H))
        if cap >= H:
            return H
        for r in range(cap, 0, -1):
            if (r * W) % 128 == 0:
                return r
        return None

    R_h = _aligned_rows(max(1, tile_pixels // max(W, 1)))
    if R_h is None:
        # TODO(synk): very wide odd-W images fall back to full-image row blocks.
        R_h = H

    # Megacore: ensure >= 2 (parallel) grid steps so both v7x TensorCores get work.
    if N * pl.cdiv(H, R_h) * n_col < 2 and H >= 2:
        r = _aligned_rows((H + 1) // 2)
        if r is not None and r < H:
            R_h = r

    def _rup(v, m):
        return ((v + m - 1) // m) * m

    o_isz = jnp.dtype(out_dtype).itemsize
    x_isz = jnp.dtype(x.dtype).itemsize

    def _vmem_estimate(rh):
        p = rh * W
        return (
            2 * _rup(C_in, 8) * _rup(p, 128) * x_isz               # x tile, 2 buffers
            + 2 * rh * KH * _rup(W, 8) * _rup(TD, 128) * o_isz     # out tile, 2 buffers
            + 2 * KH * _rup(C_in, 16) * _rup(TD, 128) * 2          # bf16 weight tile, 2 bufs
            + 2 * 8 * _rup(TD, 128) * 4                            # bias
            + _rup(p, 16) * _rup(C_in, 128) * 6                    # in-kernel xp temporaries
            + 2 * _rup(p, 8) * _rup(TD, 128) * 4                   # y + reshape temporaries
            + (6 << 20)                                            # compiler scratch slack
        )

    # Shrink the row tile until the working set fits this generation's VMEM budget.
    while _vmem_estimate(R_h) > vmem_ceiling and R_h > 1:
        r = _aligned_rows(max(1, R_h // 2))
        if r is None or r >= R_h:
            break
        R_h = r
    vmem_limit = int(min(vmem_ceiling, max(_vmem_estimate(R_h), 16 << 20)))

    P = R_h * W
    grid = (N, pl.cdiv(H, R_h), n_col)   # all axes independent -> all parallel

    # --- glue (free / tiny) ------------------------------------------------------
    x3 = x.reshape(N, C_in, H * W)       # contiguous NCHW flatten -> free (no copy)
    # weight -> (KH, C_in, KW*C_out) with columns ordered (kw, co); bias repeated per kw.
    w3 = jnp.transpose(weight, (2, 0, 3, 1)).reshape(KH, C_in, D).astype(jnp.bfloat16)
    b2 = jnp.tile(bias.astype(jnp.float32), (KW,)).reshape(1, D)

    out5 = pl.pallas_call(
        _convt_kernel,
        out_shape=jax.ShapeDtypeStruct((N, H, KH, W, D), out_dtype),
        grid_spec=pltpu.PrefetchScalarGridSpec(
            num_scalar_prefetch=0,
            grid=grid,
            in_specs=[
                pl.BlockSpec((1, C_in, P), lambda n, i, j: (n, 0, i)),
                pl.BlockSpec((KH, C_in, TD), lambda n, i, j: (0, 0, j)),
                pl.BlockSpec((1, TD), lambda n, i, j: (0, j)),
            ],
            out_specs=pl.BlockSpec((1, R_h, KH, W, TD), lambda n, i, j: (n, i, 0, 0, j)),
        ),
        compiler_params=pltpu.CompilerParams(
            dimension_semantics=("parallel", "parallel", "parallel"),
            vmem_limit_bytes=vmem_limit,
        ),
    )(x3, w3, b2)

    # Free reshape: (N, H, KH, W, KW*C_out) is exactly NHWC (N, 2H, 2W, C_out).
    out_nhwc = out5.reshape(N, H * KH, W * KW, C_out)
    if layout == "NHWC":
        return out_nhwc
    # PyTorch ConvTranspose2d returns NCHW.  This transpose re-reads and re-writes the
    # entire 4x-upsampled output in HBM; consumers that accept NHWC should request it.
    # TODO(synk): replace with a dedicated tiled transpose kernel if NCHW is mandatory
    # on the hot path.
    return jnp.transpose(out_nhwc, (0, 3, 1, 2))


def _reference(x, weight, bias):
    # Pure-JAX f32 reference for ConvTranspose2d, kernel == stride == 2, padding == 0.
    N, C_in, H, W = x.shape
    _, C_out, KH, KW = weight.shape
    y = jnp.einsum("nchw,cokl->nohkwl", x, weight)
    y = y.reshape(N, C_out, H * KH, W * KW)
    return y + bias[None, :, None, None]


if __name__ == "__main__":
    key = jax.random.PRNGKey(0)
    k_x, k_w, k_b = jax.random.split(key, 3)

    N, C_in, C_out, H, W = 2, 4, 8, 16, 16
    kernel = stride = 2

    x = jax.random.normal(k_x, (N, C_in, H, W), dtype=jnp.float32)
    # PyTorch ConvTranspose2d weight shape: (in_channels, out_channels, KH, KW)
    weight = jax.random.normal(k_w, (C_in, C_out, kernel, kernel), dtype=jnp.float32) * 0.1
    bias = jax.random.normal(k_b, (C_out,), dtype=jnp.float32) * 0.1

    fn = jax.jit(lambda a, b, c: conv_transpose2d_pallas(a, b, c, kernel=kernel, stride=stride))
    out = jax.block_until_ready(fn(x, weight, bias))

    ref = _reference(x, weight, bias)
    assert out.shape == (N, C_out, H * stride, W * stride), out.shape
    # bf16 compute (f32 accumulation) -> looser tolerance vs the f32 reference.
    assert jnp.allclose(out, ref, atol=3e-2, rtol=3e-2), float(jnp.max(jnp.abs(out - ref)))

    # Ragged-tile check (review request): H % R_h != 0 and odd channel counts.
    # tile_pixels=128 with W=16 forces R_h=8, so H=20 leaves a ragged last row block
    # whose garbage rows must be dropped by the output DMA.
    N2, C2i, C2o, H2, W2 = 1, 3, 5, 20, 16
    x2 = jax.random.normal(k_x, (N2, C2i, H2, W2), dtype=jnp.float32)
    w2 = jax.random.normal(k_w, (C2i, C2o, 2, 2), dtype=jnp.float32) * 0.1
    b2 = jax.random.normal(k_b, (C2o,), dtype=jnp.float32) * 0.1
    out2 = jax.block_until_ready(
        jax.jit(lambda a, b, c: conv_transpose2d_pallas(a, b, c, tile_pixels=128))(x2, w2, b2))
    ref2 = _reference(x2, w2, b2)
    assert out2.shape == ref2.shape, out2.shape
    assert jnp.allclose(out2, ref2, atol=3e-2, rtol=3e-2), float(jnp.max(jnp.abs(out2 - ref2)))

    print("KERNEL_OK")
</pallas_src>

<mosaic_0001>
module attributes {stable_mosaic.version = 11 : i64} {
  func.func @_convt_kernel(%arg0: i32, %arg1: i32, %arg2: i32, %arg3: memref<1x4x256xf32, #tpu.memory_space<vmem>>, %arg4: memref<2x4x16xbf16, #tpu.memory_space<vmem>>, %arg5: memref<1x16xf32, #tpu.memory_space<vmem>>, %arg6: memref<1x16x2x16x16xf32, #tpu.memory_space<vmem>>) attributes {dimension_semantics = [#tpu.dimension_semantics<parallel>, #tpu.dimension_semantics<parallel>, #tpu.dimension_semantics<parallel>], iteration_bounds = array<i64: 2, 1, 1>, scalar_prefetch = 0 : i64, scratch_operands = 0 : i64, tpu.core_type = #tpu.core_type<tc>, window_params = [{transform_indices = @transform_0, window_bounds = array<i64: 1, 4, 256>}, {transform_indices = @transform_1, window_bounds = array<i64: 2, 4, 16>}, {transform_indices = @transform_2, window_bounds = array<i64: 1, 16>}, {transform_indices = @transform_3, window_bounds = array<i64: 1, 16, 2, 16, 16>}]} {
    %c0 = arith.constant 0 : index
    %c0_0 = arith.constant 0 : index
    %c0_1 = arith.constant 0 : index
    %0 = vector.load %arg3[%c0, %c0_0, %c0_1] : memref<1x4x256xf32, #tpu.memory_space<vmem>>, vector<1x4x256xf32>
    %1 = vector.shape_cast %0 : vector<1x4x256xf32> to vector<4x256xf32>
    %2 = tpu.transpose %1, [1, 0] : vector<4x256xf32> -> vector<256x4xf32>
    %3 = arith.truncf %2 : vector<256x4xf32> to vector<256x4xbf16>
    %c0_2 = arith.constant 0 : index
    %c0_3 = arith.constant 0 : index
    %4 = vector.load %arg5[%c0_2, %c0_3] : memref<1x16xf32, #tpu.memory_space<vmem>>, vector<1x16xf32>
    %c0_4 = arith.constant 0 : index
    %c0_5 = arith.constant 0 : index
    %c0_6 = arith.constant 0 : index
    %5 = vector.load %arg4[%c0_4, %c0_5, %c0_6] : memref<2x4x16xbf16, #tpu.memory_space<vmem>>, vector<1x4x16xbf16>
    %6 = vector.shape_cast %5 : vector<1x4x16xbf16> to vector<4x16xbf16>
    %cst = arith.constant dense<0.000000e+00> : vector<256x16xf32>
    %7 = tpu.matmul %3, %6, %cst {dimension_numbers = #tpu.dot_dimension_numbers<[1], [0], [0], [1], [0, 0, 1, 1], [], []>} : vector<256x4xbf16>, vector<4x16xbf16>, vector<256x16xf32> -> vector<256x16xf32>
    %8 = vector.broadcast %4 : vector<1x16xf32> to vector<256x16xf32>
    %9 = arith.addf %7, %8 : vector<256x16xf32>
    %10 = vector.shape_cast %9 : vector<256x16xf32> to vector<16x16x16xf32>
    %c0_7 = arith.constant 0 : index
    %c0_8 = arith.constant 0 : index
    %c0_9 = arith.constant 0 : index
    %c0_10 = arith.constant 0 : index
    %c0_11 = arith.constant 0 : index
    %11 = vector.load %arg6[%c0_7, %c0_8, %c0_9, %c0_10, %c0_11] : memref<1x16x2x16x16xf32, #tpu.memory_space<vmem>>, vector<1x16x1x16x16xf32>
    %12 = vector.shape_cast %11 : vector<1x16x1x16x16xf32> to vector<16x16x16xf32>
    %13 = vector.shape_cast %10 : vector<16x16x16xf32> to vector<1x16x1x16x16xf32>
    tpu.vector_store %arg6[%c0_7, %c0_8, %c0_9, %c0_10, %c0_11], %13 {strides = array<i32>} : memref<1x16x2x16x16xf32, #tpu.memory_space<vmem>>, vector<1x16x1x16x16xf32>,
    %c1 = arith.constant 1 : index
    %c0_12 = arith.constant 0 : index
    %c0_13 = arith.constant 0 : index
    %14 = vector.load %arg4[%c1, %c0_12, %c0_13] : memref<2x4x16xbf16, #tpu.memory_space<vmem>>, vector<1x4x16xbf16>
    %15 = vector.shape_cast %14 : vector<1x4x16xbf16> to vector<4x16xbf16>
    %cst_14 = arith.constant dense<0.000000e+00> : vector<256x16xf32>
    %16 = tpu.matmul %3, %15, %cst_14 {dimension_numbers = #tpu.dot_dimension_numbers<[1], [0], [0], [1], [0, 0, 1, 1], [], []>} : vector<256x4xbf16>, vector<4x16xbf16>, vector<256x16xf32> -> vector<256x16xf32>
    %17 = vector.broadcast %4 : vector<1x16xf32> to vector<256x16xf32>
    %18 = arith.addf %16, %17 : vector<256x16xf32>
    %19 = vector.shape_cast %18 : vector<256x16xf32> to vector<16x16x16xf32>
    %c0_15 = arith.constant 0 : index
    %c0_16 = arith.constant 0 : index
    %c1_17 = arith.constant 1 : index
    %c0_18 = arith.constant 0 : index
    %c0_19 = arith.constant 0 : index
    %20 = vector.load %arg6[%c0_15, %c0_16, %c1_17, %c0_18, %c0_19] : memref<1x16x2x16x16xf32, #tpu.memory_space<vmem>>, vector<1x16x1x16x16xf32>
    %21 = vector.shape_cast %20 : vector<1x16x1x16x16xf32> to vector<16x16x16xf32>
    %22 = vector.shape_cast %19 : vector<16x16x16xf32> to vector<1x16x1x16x16xf32>
    tpu.vector_store %arg6[%c0_15, %c0_16, %c1_17, %c0_18, %c0_19], %22 {strides = array<i32>} : memref<1x16x2x16x16xf32, #tpu.memory_space<vmem>>, vector<1x16x1x16x16xf32>,
    return
  }
  func.func @transform_0(%arg0: i32, %arg1: i32, %arg2: i32) -> (i32, i32, i32) {
    %c0_i32 = arith.constant 0 : i32
    %c0_i32_0 = arith.constant 0 : i32
    return %arg0, %c0_i32, %arg1 : i32, i32, i32
  }
  func.func @transform_1(%arg0: i32, %arg1: i32, %arg2: i32) -> (i32, i32, i32) {
    %c0_i32 = arith.constant 0 : i32
    %c0_i32_0 = arith.constant 0 : i32
    %c0_i32_1 = arith.constant 0 : i32
    return %c0_i32, %c0_i32_0, %arg2 : i32, i32, i32
  }
  func.func @transform_2(%arg0: i32, %arg1: i32, %arg2: i32) -> (i32, i32) {
    %c0_i32 = arith.constant 0 : i32
    %c0_i32_0 = arith.constant 0 : i32
    return %c0_i32, %arg2 : i32, i32
  }
  func.func @transform_3(%arg0: i32, %arg1: i32, %arg2: i32) -> (i32, i32, i32, i32, i32) {
    %c0_i32 = arith.constant 0 : i32
    %c0_i32_0 = arith.constant 0 : i32
    %c0_i32_1 = arith.constant 0 : i32
    return %arg0, %arg1, %c0_i32, %c0_i32_0, %arg2 : i32, i32, i32, i32, i32
  }
}

</mosaic_0001>

<llo_original>
// kernel: tile.9
$region0: #{tile.9}
  %s0 = inlined_call_operand.vmem [shape: f32[2,8], index: 0, kind: input, shape index: {}]
  %s1 = inlined_call_operand.vmem [shape: f32[1,16], index: 1, kind: output, shape index: {}]
  $region1: #{tile.9} parent=0
    #allocation0 [shape = 'u8[4096]{0}', space=vmem, size = 0x1000, scoped, tag = 'scoped mem for output reshape']
    #allocation1 [shape = 'u8[4096]{0}', space=vmem, size = 0x1000, scoped, tag = 'scoped mem for input reshape']
    %s3 = sshll.u32 1, 2
    %s4 = ssub.s32 %s3, 1
    %v5 = vld [vmem:[%s0] sm:%s4]
    %6 = vst [vmem:[#allocation1] sm:%s4] %v5
    %v7 = vld [vmem:[#allocation1] sm:$0x1]
    %vm8 = vcmask 64512
    %9 = vst.msk [vmem:[#allocation0] sm:$0x1] %vm8, %v7
    %s10 = scalar_lea.vmem [#allocation1], 1
    %v11 = vld [vmem:[%s10] sm:$0x1]
    %12 = vrot.lane.b32.xlu0 %v11, 8
    %v13 = vpop.permute.xlu0 %12
    %vm14 = vcmask 130112
    %15 = vst.msk [vmem:[#allocation0] sm:$0x1] %vm14, %v13
    %s17 = sshll.u32 1, 1
    %s18 = ssub.s32 %s17, 1
    %v20 = vld [vmem:[#allocation0] sm:%s18]
    %s21 = sshll.u32 1, 1
    %s22 = ssub.s32 %s21, 1
    %23 = vst [vmem:[%s1] sm:%s22] %v20

// kernel: tile.8
$region0: #{tile.8}
  #allocation0 [shape = 's32[1]{0}', space=sflag, size = 0x4, scoped, tag = 'scoped memory for tile.8']
  %s0 = inlined_call_operand.vmem [shape: f32[8], index: 0, kind: input, shape index: {}]
  %s1 = inlined_call_operand.vmem [shape: f32[2,8], index: 1, kind: output, shape index: {}]
  // Predicated region
  $region2: #{tile.8} parent=0 // pred_check
    _
  $region3: #{tile.8} parent=0 // pred_check_branch
    %3 = sbr.rel (0) target = $region5
  $region4: #{tile.8} parent=0 // pred_region
    _
  $region5: #{tile.8} parent=0 // pred_fallthru
    _
  %v4 = vld [vmem:[%s0] ss:$0 sm:$0xff]
  %5 = vst [vmem:[%s1] sm:$0x3] %v4

// kernel: _lambda_.1
$region0: #{_lambda_.1}
  #allocation0 [shape = 'u32[]', space=smem, size = 0x4, offset = 0x4, fixed_abs, tag = 'smem constant byte address 0x4 - core index']
  #allocation1 [shape = 'u32[144,128]{1,0:T(1,128)}', space=vmem, size = 0x12000, scoped, tag = 'internal scratch']
  %s0 = inlined_call_operand.vmem [shape: f32[2,4,256], index: 0, kind: input, shape index: {}]
  %s1 = inlined_call_operand.vmem [shape: bf16[2,4,16], index: 1, kind: input, shape index: {}]
  %s2 = inlined_call_operand.vmem [shape: f32[1,16], index: 2, kind: input, shape index: {}]
  %s3 = inlined_call_operand.vmem [shape: f32[2,16,2,16,16], index: 3, kind: output, shape index: {}]
  %s4 = sld [smem:[#allocation0]]
  $region45: #{_lambda_.1} parent=0
    _
  %s6 = ssub.s32 1, %s4
  %s7 = scalar_select 0, %s6, %s4
  loop: start=0, step=1, limit=4
  $region2: #{_lambda_.1} parent=0 // loop_pre_header
    _
  $region3: #{_lambda_.1} parent=0 // loop_header
    %s9 = sphi 0, %s13
    %p10 = scmp.ge.s32.totalorder %s9, 4
    %s16 = sphi 0, %s35
    %s17 = sphi 0, %s31
    %s18 = sphi 0, %s27
    %s19 = sphi 0, %s16
    %s20 = sphi 0, %s17
    %s21 = sphi 0, %s18
    %s22 = sphi 0, %s19
    %s23 = sphi 0, %s20
    %s24 = sphi 0, %s21
    %s40 = sphi 0, %s42
    %s43 = sphi 0, %s40
    %s44 = sphi 0, %s43
    %s60 = sphi 0, %s44
    %s66 = sphi 0, %s68
    %s69 = sphi 0, %s66
    %s70 = sphi 0, %s69
    %s86 = sphi 0, %s70
    %s92 = sphi 0, %s94
    %s95 = sphi 0, %s92
    %s96 = sphi 0, %s95
    %s112 = sphi 0, %s96
    %s122 = sphi 0, %s124
    %s125 = sphi 0, %s122
    %s126 = sphi 0, %s125
    %s142 = sphi 0, %s126
  $region4: #{_lambda_.1} parent=0 // loop_header_branch
    %12 = sbr.rel (%p10) target = $region8
  $region5: #{_lambda_.1} parent=0 // loop_body
    %s14 = ssub.s32 %s9, 1
    %s15 = ssub.s32 %s9, 2
    %s25 = sadd.s32 1, %s18
    %p26 = scmp.ge.s32.totalorder %s25, 1
    %s27 = scalar_select %p26, 0, %s25
    %s28 = sadd.s32 1, %s17
    %s29 = scalar_select %p26, %s28, %s17
    %p30 = scmp.ge.s32.totalorder %s29, 1
    %s31 = scalar_select %p30, 0, %s29
    %s32 = sadd.s32 1, %s16
    %s33 = scalar_select %p30, %s32, %s16
    %p34 = scmp.ge.s32.totalorder %s33, 2
    %s35 = scalar_select %p34, 0, %s33
    %s36 = ssub.s32 %s16, %s35
    %s37 = ssub.s32 %s17, %s31
    %s38 = sor.u32 %s36, %s37
    %p39 = scmp.eq.s32.totalorder %s38, 0
    %s41 = sadd.s32 %s40, 1
    %s42 = scalar_select %p39, %s40, %s41
    %p45 = pneg %p39
    %p46 = scmp.eq.s32.totalorder %s9, 1
    %p47 = por %p45, %p46
    %p48 = scmp.ne.s32.totalorder %s40, %s43
    %p49 = scmp.eq.s32.totalorder %s9, 0
    %p50 = por %p48, %p49
    %p51 = scmp.ne.s32.totalorder %s40, %s43
    %p52 = scmp.eq.s32.totalorder %s14, 1
    %p53 = por %p51, %p52
    %p54 = scmp.ne.s32.totalorder %s43, %s44
    %p55 = scmp.eq.s32.totalorder %s14, 0
    %p56 = por %p54, %p55
    %p57 = scmp.ne.s32.totalorder %s43, %s44
    %p58 = scmp.eq.s32.totalorder %s15, 1
    %p59 = por %p57, %p58
    %p61 = scmp.ne.s32.totalorder %s44, %s60
    %p62 = scmp.eq.s32.totalorder %s15, 0
    %p63 = por %p61, %p62
    %s64 = ssub.s32 %s18, %s27
    %p65 = scmp.eq.s32.totalorder %s64, 0
    %s67 = sadd.s32 %s66, 1
    %s68 = scalar_select %p65, %s66, %s67
    %p71 = pneg %p65
    %p72 = scmp.eq.s32.totalorder %s9, 1
    %p73 = por %p71, %p72
    %p74 = scmp.ne.s32.totalorder %s66, %s69
    %p75 = scmp.eq.s32.totalorder %s9, 0
    %p76 = por %p74, %p75
    %p77 = scmp.ne.s32.totalorder %s66, %s69
    %p78 = scmp.eq.s32.totalorder %s14, 1
    %p79 = por %p77, %p78
    %p80 = scmp.ne.s32.totalorder %s69, %s70
    %p81 = scmp.eq.s32.totalorder %s14, 0
    %p82 = por %p80, %p81
    %p83 = scmp.ne.s32.totalorder %s69, %s70
    %p84 = scmp.eq.s32.totalorder %s15, 1
    %p85 = por %p83, %p84
    %p87 = scmp.ne.s32.totalorder %s70, %s86
    %p88 = scmp.eq.s32.totalorder %s15, 0
    %p89 = por %p87, %p88
    %s90 = ssub.s32 %s18, %s27
    %p91 = scmp.eq.s32.totalorder %s90, 0
    %s93 = sadd.s32 %s92, 1
    %s94 = scalar_select %p91, %s92, %s93
    %p97 = pneg %p91
    %p98 = scmp.eq.s32.totalorder %s9, 1
    %p99 = por %p97, %p98
    %p100 = scmp.ne.s32.totalorder %s92, %s95
    %p101 = scmp.eq.s32.totalorder %s9, 0
    %p102 = por %p100, %p101
    %p103 = scmp.ne.s32.totalorder %s92, %s95
    %p104 = scmp.eq.s32.totalorder %s14, 1
    %p105 = por %p103, %p104
    %p106 = scmp.ne.s32.totalorder %s95, %s96
    %p107 = scmp.eq.s32.totalorder %s14, 0
    %p108 = por %p106, %p107
    %p109 = scmp.ne.s32.totalorder %s95, %s96
    %p110 = scmp.eq.s32.totalorder %s15, 1
    %p111 = por %p109, %p110
    %p113 = scmp.ne.s32.totalorder %s96, %s112
    %p114 = scmp.eq.s32.totalorder %s15, 0
    %p115 = por %p113, %p114
    %s116 = ssub.s32 %s16, %s35
    %s117 = ssub.s32 %s17, %s31
    %s118 = sor.u32 %s116, %s117
    %s119 = ssub.s32 %s18, %s27
    %s120 = sor.u32 %s118, %s119
    %p121 = scmp.eq.s32.totalorder %s120, 0
    %s123 = sadd.s32 %s122, 1
    %s124 = scalar_select %p121, %s122, %s123
    %p127 = pneg %p121
    %p128 = scmp.eq.s32.totalorder %s9, 1
    %p129 = por %p127, %p128
    %p130 = scmp.ne.s32.totalorder %s122, %s125
    %p131 = scmp.eq.s32.totalorder %s9, 0
    %p132 = por %p130, %p131
    %p133 = scmp.ne.s32.totalorder %s122, %s125
    %p134 = scmp.eq.s32.totalorder %s14, 1
    %p135 = por %p133, %p134
    %p136 = scmp.ne.s32.totalorder %s125, %s126
    %p137 = scmp.eq.s32.totalorder %s14, 0
    %p138 = por %p136, %p137
    %p139 = scmp.ne.s32.totalorder %s125, %s126
    %p140 = scmp.eq.s32.totalorder %s15, 1
    %p141 = por %p139, %p140
    %p143 = scmp.ne.s32.totalorder %s126, %s142
    %p144 = scmp.eq.s32.totalorder %s15, 0
    %p145 = por %p143, %p144
    %p146 = scmp.le.s32.totalorder 1, %s9
    %p147 = scmp.lt.s32.totalorder %s9, 3
    %p148 = pnand %p146, %p147
    %p149 = pneg %p148
    // Predicated region
    $region9: #{_lambda_.1} parent=5 // pred_check
      _
    $region10: #{_lambda_.1} parent=5 // pred_check_branch
      %151 = sbr.rel (%p148) target = $region12
    $region11: #{_lambda_.1} parent=5 // pred_region
      %s152 = ssub.s32 %s9, 1
      // Predicated region
      $region13: #{_lambda_.1} parent=11 // pred_check
        %p153 = pneg %p82
      $region14: #{_lambda_.1} parent=11 // pred_check_branch
        %155 = sbr.rel (%p153) target = $region16
      $region15: #{_lambda_.1} parent=11 // pred_region
        %p156 = scmp.lt.s32.totalorder %s21, 0
        %s157 = scalar_select %p156, %s21, 0
        %s158 = smul.addr %s157, 2
        %s159 = scalar_lea.vmem %s1, %s158
      $region16: #{_lambda_.1} parent=11 // pred_fallthru
        _
      // Predicated region
      $region17: #{_lambda_.1} parent=11 // pred_check
        %p160 = pneg %p108
      $region18: #{_lambda_.1} parent=11 // pred_check_branch
        %162 = sbr.rel (%p160) target = $region20
      $region19: #{_lambda_.1} parent=11 // pred_region
        %p163 = scmp.lt.s32.totalorder %s21, 0
        %s164 = scalar_select %p163, %s21, 0
        %s165 = scalar_lea.vmem %s2, %s164
      $region20: #{_lambda_.1} parent=11 // pred_fallthru
        _
    $region12: #{_lambda_.1} parent=5 // pred_fallthru
      _
    %p166 = scmp.lt.s32.totalorder %s9, 2
    // Predicated region
    $region21: #{_lambda_.1} parent=5 // pred_check
      %p167 = pneg %p166
    $region22: #{_lambda_.1} parent=5 // pred_check_branch
      %169 = sbr.rel (%p167) target = $region24
    $region23: #{_lambda_.1} parent=5 // pred_region
      // Predicated region
      $region25: #{_lambda_.1} parent=23 // pred_check
        %p170 = pneg %p50
      $region26: #{_lambda_.1} parent=23 // pred_check_branch
        %172 = sbr.rel (%p170) target = $region28
      $region27: #{_lambda_.1} parent=23 // pred_region
        %s173 = smul.u32 2, %s17
        %p174 = scmp.lt.s32.totalorder %s16, 1
        %s175 = scalar_select %p174, %s16, 1
        %p176 = scmp.lt.s32.totalorder %s173, 1
        %s177 = scalar_select %p176, %s173, 1
        %s178 = smul.addr %s175, 2
        %s179 = sadd.s32 %s177, %s178
        %s180 = smul.addr %s179, 4
        %s181 = scalar_lea.vmem %s0, %s180
        %s182 = smul.u32 2, %s17
      $region28: #{_lambda_.1} parent=23 // pred_fallthru
        _
    $region24: #{_lambda_.1} parent=5 // pred_fallthru
      _
    %p183 = scmp.le.s32.totalorder 1, %s9
    %p184 = scmp.lt.s32.totalorder %s9, 3
    %p185 = pnand %p183, %p184
    %p186 = pneg %p185
    // Predicated region
    $region29: #{_lambda_.1} parent=5 // pred_check
      _
    $region30: #{_lambda_.1} parent=5 // pred_check_branch
      %188 = sbr.rel (%p185) target = $region32
    $region31: #{_lambda_.1} parent=5 // pred_region
      %s189 = ssub.s32 %s9, 1
      %s190 = smul.u32 2, %s20
      %p191 = scmp.lt.s32.totalorder %s19, 1
      %s192 = scalar_select %p191, %s19, 1
      %p193 = scmp.lt.s32.totalorder %s190, 1
      %s194 = scalar_select %p193, %s190, 1
      %s195 = smul.addr %s192, 2
      %s196 = sadd.s32 %s194, %s195
      %s197 = smul.addr %s196, 4
      %s198 = scalar_lea.vmem %s0, %s197
      %p199 = pneg %p56
      %p200 = pneg %p53
      %p201 = scmp.lt.s32.totalorder %s21, 0
      %s202 = scalar_select %p201, %s21, 0
      %s203 = smul.addr %s202, 2
      %s204 = scalar_lea.vmem %s1, %s203
      %p205 = pneg %p82
      %p206 = pneg %p79
      %p207 = scmp.lt.s32.totalorder %s21, 0
      %s208 = scalar_select %p207, %s21, 0
      %s209 = scalar_lea.vmem %s2, %s208
      %p210 = pneg %p108
      %p211 = pneg %p105
      %p212 = pneg %p138
      %p213 = pneg %p135
      %s214 = smul.u32 16, %s20
      %p215 = scmp.lt.s32.totalorder %s19, 1
      %s216 = scalar_select %p215, %s19, 1
      %p217 = scmp.lt.s32.totalorder %s214, 15
      %s218 = scalar_select %p217, %s214, 15
      %p219 = scmp.lt.s32.totalorder %s21, 0
      %s220 = scalar_select %p219, %s21, 0
      %s221 = smul.addr %s218, 4
      %s222 = sadd.s32 %s220, %s221
      %s223 = smul.addr %s216, 64
      %s224 = sadd.s32 %s222, %s223
      %s225 = smul.addr %s224, 8
      %s226 = scalar_lea.vmem %s3, %s225
      %s227 = smul.u32 2, %s20
      %p228 = scmp.lt.s32.totalorder %s19, 1
      %s229 = scalar_select %p228, %s19, 1
      %p230 = scmp.lt.s32.totalorder %s227, 1
      %s231 = scalar_select %p230, %s227, 1
      %s232 = smul.addr %s229, 2
      %s233 = sadd.s32 %s231, %s232
      %s234 = smul.addr %s233, 4
      %s235 = scalar_lea.vmem %s0, %s234
      %s236 = smul.u32 2, %s20
      %p237 = scmp.lt.s32.totalorder %s21, 0
      %s238 = scalar_select %p237, %s21, 0
      %s239 = smul.addr %s238, 2
      %s240 = scalar_lea.vmem %s1, %s239
      %p241 = scmp.lt.s32.totalorder %s21, 0
      %s242 = scalar_select %p241, %s21, 0
      %s243 = scalar_lea.vmem %s2, %s242
      %s244 = smul.u32 16, %s20
      %p245 = scmp.lt.s32.totalorder %s19, 1
      %s246 = scalar_select %p245, %s19, 1
      %p247 = scmp.lt.s32.totalorder %s244, 15
      %s248 = scalar_select %p247, %s244, 15
      %p249 = scmp.lt.s32.totalorder %s21, 0
      %s250 = scalar_select %p249, %s21, 0
      %s251 = smul.addr %s248, 4
      %s252 = sadd.s32 %s250, %s251
      %s253 = smul.addr %s246, 64
      %s254 = sadd.s32 %s252, %s253
      %s255 = smul.addr %s254, 8
      %s256 = scalar_lea.vmem %s3, %s255
      %s257 = smul.u32 16, %s20
      %v259 = vld [vmem:[%s235] sm:$0xff]
      %v261 = vcombine.high %v259, %v259
      %263 = vxpose.xlu0.b32.start [1/16] %v259, 128
      %264 = vxpose.xlu0.b32.cont [2/16] 0.0, 128
      %265 = vxpose.xlu0.b32.cont [3/16] 0.0, 128
      %266 = vxpose.xlu0.b32.cont [4/16] 0.0, 128
      %267 = vxpose.xlu0.b32.cont [5/16] 0.0, 128
      %268 = vxpose.xlu0.b32.cont [6/16] 0.0, 128
      %269 = vxpose.xlu0.b32.cont [7/16] 0.0, 128
      %270 = vxpose.xlu0.b32.cont [8/16] 0.0, 128
      %271 = vxpose.xlu0.b32.cont [9/16] 0.0, 128
      %272 = vxpose.xlu0.b32.cont [10/16] 0.0, 128
      %273 = vxpose.xlu0.b32.cont [11/16] 0.0, 128
      %274 = vxpose.xlu0.b32.cont [12/16] 0.0, 128
      %275 = vxpose.xlu0.b32.cont [13/16] 0.0, 128
      %276 = vxpose.xlu0.b32.cont [14/16] 0.0, 128
      %277 = vxpose.xlu0.b32.cont [15/16] 0.0, 128
      %278 = vxpose.xlu0.b32.end [16/16] 0.0, 128
      %v279 = vpop.trf.xlu0
      %v280 = vpop.trf.xlu0
      %v281 = vpop.trf.xlu0
      %v282 = vpop.trf.xlu0
      %v283 = vpop.trf.xlu0
      %v284 = vpop.trf.xlu0
      %v285 = vpop.trf.xlu0
      %v286 = vpop.trf.xlu0
      %v287 = vpop.trf.xlu0
      %v288 = vpop.trf.xlu0
      %v289 = vpop.trf.xlu0
      %v290 = vpop.trf.xlu0
      %v291 = vpop.trf.xlu0
      %v292 = vpop.trf.xlu0
      %v293 = vpop.trf.xlu0
      %v294 = vpop.trf.xlu0
      %295 = vxpose.xlu0.b32.start [1/16] %v261, 128
      %296 = vxpose.xlu0.b32.cont [2/16] 0.0, 128
      %297 = vxpose.xlu0.b32.cont [3/16] 0.0, 128
      %298 = vxpose.xlu0.b32.cont [4/16] 0.0, 128
      %299 = vxpose.xlu0.b32.cont [5/16] 0.0, 128
      %300 = vxpose.xlu0.b32.cont [6/16] 0.0, 128
      %301 = vxpose.xlu0.b32.cont [7/16] 0.0, 128
      %302 = vxpose.xlu0.b32.cont [8/16] 0.0, 128
      %303 = vxpose.xlu0.b32.cont [9/16] 0.0, 128
      %304 = vxpose.xlu0.b32.cont [10/16] 0.0, 128
      %305 = vxpose.xlu0.b32.cont [11/16] 0.0, 128
      %306 = vxpose.xlu0.b32.cont [12/16] 0.0, 128
      %307 = vxpose.xlu0.b32.cont [13/16] 0.0, 128
      %308 = vxpose.xlu0.b32.cont [14/16] 0.0, 128
      %309 = vxpose.xlu0.b32.cont [15/16] 0.0, 128
      %310 = vxpose.xlu0.b32.end [16/16] 0.0, 128
      %v311 = vpop.trf.xlu0
      %v312 = vpop.trf.xlu0
      %v313 = vpop.trf.xlu0
      %v314 = vpop.trf.xlu0
      %v315 = vpop.trf.xlu0
      %v316 = vpop.trf.xlu0
      %v317 = vpop.trf.xlu0
      %v318 = vpop.trf.xlu0
      %v319 = vpop.trf.xlu0
      %v320 = vpop.trf.xlu0
      %v321 = vpop.trf.xlu0
      %v322 = vpop.trf.xlu0
      %v323 = vpop.trf.xlu0
      %v324 = vpop.trf.xlu0
      %v325 = vpop.trf.xlu0
      %v326 = vpop.trf.xlu0
      %v327 = vpack.c.bf16 %v280, %v279
      %v328 = vpack.c.bf16 %v282, %v281
      %v329 = vpack.c.bf16 %v284, %v283
      %v330 = vpack.c.bf16 %v286, %v285
      %v331 = vpack.c.bf16 %v288, %v287
      %v332 = vpack.c.bf16 %v290, %v289
      %v333 = vpack.c.bf16 %v292, %v291
      %v334 = vpack.c.bf16 %v294, %v293
      %v335 = vpack.c.bf16 %v312, %v311
      %v336 = vpack.c.bf16 %v314, %v313
      %v337 = vpack.c.bf16 %v316, %v315
      %v338 = vpack.c.bf16 %v318, %v317
      %v339 = vpack.c.bf16 %v320, %v319
      %v340 = vpack.c.bf16 %v322, %v321
      %v341 = vpack.c.bf16 %v324, %v323
      %v342 = vpack.c.bf16 %v326, %v325
      %v343 = vld [vmem:[%s243] sm:$0x1]
      %v344 = vld [vmem:[%s240] sm:$0x3]
      %v346 = vlaneseq
      %v347 = vshrl.u32 %v346, 7
      %v348 = vsub.s32 0, %v347
      %v349 = vrot.slane %v343, %v348
      %vm351 = vcmask 31744
      %v353 = vsel %vm351, %v327, 0
      %v356 = vsel %vm351, %v328, 0
      %v359 = vsel %vm351, %v329, 0
      %v362 = vsel %vm351, %v330, 0
      %v365 = vsel %vm351, %v331, 0
      %v368 = vsel %vm351, %v332, 0
      %v371 = vsel %vm351, %v333, 0
      %v374 = vsel %vm351, %v334, 0
      %v377 = vsel %vm351, %v335, 0
      %v380 = vsel %vm351, %v336, 0
      %v383 = vsel %vm351, %v337, 0
      %v386 = vsel %vm351, %v338, 0
      %v389 = vsel %vm351, %v339, 0
      %v392 = vsel %vm351, %v340, 0
      %v395 = vsel %vm351, %v341, 0
      %v398 = vsel %vm351, %v342, 0
      %vm400 = vcmask 1041408
      %v402 = vsel %vm400, %v344, 0
      %404 = vmatprep.subr.bf16.mxu0 0
      %405 = vmatpush1.bf16.msra.mxu0 0
      %406 = vmatprep.subr.bf16.mxu0 0
      %407 = vmatpush1.bf16.msra.mxu0 0
      %408 = vmatprep.subr.bf16.mxu0 0
      %409 = vmatpush1.bf16.msra.mxu0 0
      %410 = vmatprep.subr.bf16.mxu0 0
      %411 = vmatpush1.bf16.msra.mxu0 0
      %412 = vmatprep.subr.bf16.mxu0 0
      %413 = vmatpush1.bf16.msra.mxu0 0
      %414 = vmatprep.subr.bf16.mxu0 0
      %415 = vmatpush1.bf16.msra.mxu0 0
      %416 = vmatprep.subr.bf16.mxu0 0
      %417 = vmatpush1.bf16.msra.mxu0 0
      %418 = vmatprep.subr.bf16.mxu0 0
      %419 = vmatpush1.bf16.msra.mxu0 %v402
      %420 = vmatprep.subr.bf16.mxu0 0
      %421 = vmatpush2.bf16.msra.mxu0 0
      %422 = vmatprep.subr.bf16.mxu0 0
      %423 = vmatpush2.bf16.msra.mxu0 0
      %424 = vmatprep.subr.bf16.mxu0 0
      %425 = vmatpush2.bf16.msra.mxu0 0
      %426 = vmatprep.subr.bf16.mxu0 0
      %427 = vmatpush2.bf16.msra.mxu0 0
      %428 = vmatprep.subr.bf16.mxu0 0
      %429 = vmatpush2.bf16.msra.mxu0 0
      %430 = vmatprep.subr.bf16.mxu0 0
      %431 = vmatpush2.bf16.msra.mxu0 0
      %432 = vmatprep.subr.bf16.mxu0 0
      %433 = vmatpush2.bf16.msra.mxu0 0
      %434 = vmatprep.subr.bf16.mxu0 0
      %435 = vmatpush2.bf16.msra.mxu0 0
      %436 = vmatprep.mubr.bf16.mxu0 0
      %437 = vmatmul.mubr.bf16.gmra.mxu0 %v353
      %v438 = vpop.f32.mrf.mxu0
      %v439 = vadd.f32 %v349, %v438
      %v440 = vpop.f32.mrf.mxu0
      %v441 = vpop.f32.mrf.mxu0
      %v442 = vadd.f32 %v349, %v441
      %v443 = vpop.f32.mrf.mxu0
      %444 = vmatprep.mubr.bf16.mxu0 0
      %445 = vmatmul.mubr.bf16.gmra.mxu0 %v356
      %v446 = vpop.f32.mrf.mxu0
      %v447 = vadd.f32 %v349, %v446
      %v448 = vpop.f32.mrf.mxu0
      %v449 = vpop.f32.mrf.mxu0
      %v450 = vadd.f32 %v349, %v449
      %v451 = vpop.f32.mrf.mxu0
      %452 = vmatprep.mubr.bf16.mxu0 0
      %453 = vmatmul.mubr.bf16.gmra.mxu0 %v359
      %v454 = vpop.f32.mrf.mxu0
      %v455 = vadd.f32 %v349, %v454
      %v456 = vpop.f32.mrf.mxu0
      %v457 = vpop.f32.mrf.mxu0
      %v458 = vadd.f32 %v349, %v457
      %v459 = vpop.f32.mrf.mxu0
      %460 = vmatprep.mubr.bf16.mxu0 0
      %461 = vmatmul.mubr.bf16.gmra.mxu0 %v362
      %v462 = vpop.f32.mrf.mxu0
      %v463 = vadd.f32 %v349, %v462
      %v464 = vpop.f32.mrf.mxu0
      %v465 = vpop.f32.mrf.mxu0
      %v466 = vadd.f32 %v349, %v465
      %v467 = vpop.f32.mrf.mxu0
      %468 = vmatprep.mubr.bf16.mxu0 0
      %469 = vmatmul.mubr.bf16.gmra.mxu0 %v365
      %v470 = vpop.f32.mrf.mxu0
      %v471 = vadd.f32 %v349, %v470
      %v472 = vpop.f32.mrf.mxu0
      %v473 = vpop.f32.mrf.mxu0
      %v474 = vadd.f32 %v349, %v473
      %v475 = vpop.f32.mrf.mxu0
      %476 = vmatprep.mubr.bf16.mxu0 0
      %477 = vmatmul.mubr.bf16.gmra.mxu0 %v368
      %v478 = vpop.f32.mrf.mxu0
      %v479 = vadd.f32 %v349, %v478
      %v480 = vpop.f32.mrf.mxu0
      %v481 = vpop.f32.mrf.mxu0
      %v482 = vadd.f32 %v349, %v481
      %v483 = vpop.f32.mrf.mxu0
      %484 = vmatprep.mubr.bf16.mxu0 0
      %485 = vmatmul.mubr.bf16.gmra.mxu0 %v371
      %v486 = vpop.f32.mrf.mxu0
      %v487 = vadd.f32 %v349, %v486
      %v488 = vpop.f32.mrf.mxu0
      %v489 = vpop.f32.mrf.mxu0
      %v490 = vadd.f32 %v349, %v489
      %v491 = vpop.f32.mrf.mxu0
      %492 = vmatprep.mubr.bf16.mxu0 0
      %493 = vmatmul.mubr.bf16.gmra.mxu0 %v374
      %v494 = vpop.f32.mrf.mxu0
      %v495 = vadd.f32 %v349, %v494
      %v496 = vpop.f32.mrf.mxu0
      %v497 = vpop.f32.mrf.mxu0
      %v498 = vadd.f32 %v349, %v497
      %v499 = vpop.f32.mrf.mxu0
      %500 = vmatprep.mubr.bf16.mxu0 0
      %501 = vmatmul.mubr.bf16.gmra.mxu0 %v377
      %v502 = vpop.f32.mrf.mxu0
      %v503 = vadd.f32 %v349, %v502
      %v504 = vpop.f32.mrf.mxu0
      %v505 = vpop.f32.mrf.mxu0
      %v506 = vadd.f32 %v349, %v505
      %v507 = vpop.f32.mrf.mxu0
      %508 = vmatprep.mubr.bf16.mxu0 0
      %509 = vmatmul.mubr.bf16.gmra.mxu0 %v380
      %v510 = vpop.f32.mrf.mxu0
      %v511 = vadd.f32 %v349, %v510
      %v512 = vpop.f32.mrf.mxu0
      %v513 = vpop.f32.mrf.mxu0
      %v514 = vadd.f32 %v349, %v513
      %v515 = vpop.f32.mrf.mxu0
      %516 = vmatprep.mubr.bf16.mxu0 0
      %517 = vmatmul.mubr.bf16.gmra.mxu0 %v383
      %v518 = vpop.f32.mrf.mxu0
      %v519 = vadd.f32 %v349, %v518
      %v520 = vpop.f32.mrf.mxu0
      %v521 = vpop.f32.mrf.mxu0
      %v522 = vadd.f32 %v349, %v521
      %v523 = vpop.f32.mrf.mxu0
      %524 = vmatprep.mubr.bf16.mxu0 0
      %525 = vmatmul.mubr.bf16.gmra.mxu0 %v386
      %v526 = vpop.f32.mrf.mxu0
      %v527 = vadd.f32 %v349, %v526
      %v528 = vpop.f32.mrf.mxu0
      %v529 = vpop.f32.mrf.mxu0
      %v530 = vadd.f32 %v349, %v529
      %v531 = vpop.f32.mrf.mxu0
      %532 = vmatprep.mubr.bf16.mxu0 0
      %533 = vmatmul.mubr.bf16.gmra.mxu0 %v389
      %v534 = vpop.f32.mrf.mxu0
      %v535 = vadd.f32 %v349, %v534
      %v536 = vpop.f32.mrf.mxu0
      %v537 = vpop.f32.mrf.mxu0
      %v538 = vadd.f32 %v349, %v537
      %v539 = vpop.f32.mrf.mxu0
      %540 = vmatprep.mubr.bf16.mxu0 0
      %541 = vmatmul.mubr.bf16.gmra.mxu0 %v392
      %v542 = vpop.f32.mrf.mxu0
      %v543 = vadd.f32 %v349, %v542
      %v544 = vpop.f32.mrf.mxu0
      %v545 = vpop.f32.mrf.mxu0
      %v546 = vadd.f32 %v349, %v545
      %v547 = vpop.f32.mrf.mxu0
      %548 = vmatprep.mubr.bf16.mxu0 0
      %549 = vmatmul.mubr.bf16.gmra.mxu0 %v395
      %v550 = vpop.f32.mrf.mxu0
      %v551 = vadd.f32 %v349, %v550
      %v552 = vpop.f32.mrf.mxu0
      %v553 = vpop.f32.mrf.mxu0
      %v554 = vadd.f32 %v349, %v553
      %v555 = vpop.f32.mrf.mxu0
      %556 = vmatprep.mubr.bf16.mxu0 0
      %557 = vmatmul.mubr.bf16.gmra.mxu0 %v398
      %v558 = vpop.f32.mrf.mxu0
      %v559 = vadd.f32 %v349, %v558
      %v560 = vpop.f32.mrf.mxu0
      %v561 = vpop.f32.mrf.mxu0
      %v562 = vadd.f32 %v349, %v561
      %v563 = vpop.f32.mrf.mxu0
      %564 = vdwg.mxu0
      %vm565 = vcmask 130048
      %566 = vst.msk [vmem:[%s256] sm:$0xff] %vm565, %v439
      %567 = vst.msk [vmem:[%s256 + $0x8] sm:$0xff] %vm565, %v442
      %568 = vst.msk [vmem:[%s256 + $0x20] sm:$0xff] %vm565, %v447
      %569 = vst.msk [vmem:[%s256 + $0x28] sm:$0xff] %vm565, %v450
      %570 = vst.msk [vmem:[%s256 + $0x40] sm:$0xff] %vm565, %v455
      %571 = vst.msk [vmem:[%s256 + $0x48] sm:$0xff] %vm565, %v458
      %572 = vst.msk [vmem:[%s256 + $0x60] sm:$0xff] %vm565, %v463
      %573 = vst.msk [vmem:[%s256 + $0x68] sm:$0xff] %vm565, %v466
      %574 = vst.msk [vmem:[%s256 + $0x80] sm:$0xff] %vm565, %v471
      %575 = vst.msk [vmem:[%s256 + $0x88] sm:$0xff] %vm565, %v474
      %576 = vst.msk [vmem:[%s256 + $0xa0] sm:$0xff] %vm565, %v479
      %577 = vst.msk [vmem:[%s256 + $0xa8] sm:$0xff] %vm565, %v482
      %578 = vst.msk [vmem:[%s256 + $0xc0] sm:$0xff] %vm565, %v487
      %579 = vst.msk [vmem:[%s256 + $0xc8] sm:$0xff] %vm565, %v490
      %580 = vst.msk [vmem:[%s256 + $0xe0] sm:$0xff] %vm565, %v495
      %581 = vst.msk [vmem:[%s256 + $0xe8] sm:$0xff] %vm565, %v498
      %582 = vst.msk [vmem:[%s256 + $0x100] sm:$0xff] %vm565, %v503
      %583 = vst.msk [vmem:[%s256 + $0x108] sm:$0xff] %vm565, %v506
      %584 = vst.msk [vmem:[%s256 + $0x120] sm:$0xff] %vm565, %v511
      %585 = vst.msk [vmem:[%s256 + $0x128] sm:$0xff] %vm565, %v514
      %586 = vst.msk [vmem:[%s256 + $0x140] sm:$0xff] %vm565, %v519
      %587 = vst.msk [vmem:[%s256 + $0x148] sm:$0xff] %vm565, %v522
      %588 = vst.msk [vmem:[%s256 + $0x160] sm:$0xff] %vm565, %v527
      %589 = vst.msk [vmem:[%s256 + $0x168] sm:$0xff] %vm565, %v530
      %590 = vst.msk [vmem:[%s256 + $0x180] sm:$0xff] %vm565, %v535
      %591 = vst.msk [vmem:[%s256 + $0x188] sm:$0xff] %vm565, %v538
      %592 = vst.msk [vmem:[%s256 + $0x1a0] sm:$0xff] %vm565, %v543
      %593 = vst.msk [vmem:[%s256 + $0x1a8] sm:$0xff] %vm565, %v546
      %594 = vst.msk [vmem:[%s256 + $0x1c0] sm:$0xff] %vm565, %v551
      %595 = vst.msk [vmem:[%s256 + $0x1c8] sm:$0xff] %vm565, %v554
      %596 = vst.msk [vmem:[%s256 + $0x1e0] sm:$0xff] %vm565, %v559
      %597 = vst.msk [vmem:[%s256 + $0x1e8] sm:$0xff] %vm565, %v562
      %s598 = scalar_lea.vmem %s240, 2
      %v599 = vld [vmem:[%s598] sm:$0x3]
      %v601 = vsel %vm400, %v599, 0
      %603 = vmatprep.subr.bf16.mxu0 0
      %604 = vmatpush1.bf16.msra.mxu0 0
      %605 = vmatprep.subr.bf16.mxu0 0
      %606 = vmatpush1.bf16.msra.mxu0 0
      %607 = vmatprep.subr.bf16.mxu0 0
      %608 = vmatpush1.bf16.msra.mxu0 0
      %609 = vmatprep.subr.bf16.mxu0 0
      %610 = vmatpush1.bf16.msra.mxu0 0
      %611 = vmatprep.subr.bf16.mxu0 0
      %612 = vmatpush1.bf16.msra.mxu0 0
      %613 = vmatprep.subr.bf16.mxu0 0
      %614 = vmatpush1.bf16.msra.mxu0 0
      %615 = vmatprep.subr.bf16.mxu0 0
      %616 = vmatpush1.bf16.msra.mxu0 0
      %617 = vmatprep.subr.bf16.mxu0 0
      %618 = vmatpush1.bf16.msra.mxu0 %v601
      %619 = vmatprep.subr.bf16.mxu0 0
      %620 = vmatpush2.bf16.msra.mxu0 0
      %621 = vmatprep.subr.bf16.mxu0 0
      %622 = vmatpush2.bf16.msra.mxu0 0
      %623 = vmatprep.subr.bf16.mxu0 0
      %624 = vmatpush2.bf16.msra.mxu0 0
      %625 = vmatprep.subr.bf16.mxu0 0
      %626 = vmatpush2.bf16.msra.mxu0 0
      %627 = vmatprep.subr.bf16.mxu0 0
      %628 = vmatpush2.bf16.msra.mxu0 0
      %629 = vmatprep.subr.bf16.mxu0 0
      %630 = vmatpush2.bf16.msra.mxu0 0
      %631 = vmatprep.subr.bf16.mxu0 0
      %632 = vmatpush2.bf16.msra.mxu0 0
      %633 = vmatprep.subr.bf16.mxu0 0
      %634 = vmatpush2.bf16.msra.mxu0 0
      %635 = vmatprep.mubr.bf16.mxu0 0
      %636 = vmatmul.mubr.bf16.gmra.mxu0 %v353
      %v637 = vpop.f32.mrf.mxu0
      %v638 = vadd.f32 %v349, %v637
      %v639 = vpop.f32.mrf.mxu0
      %v640 = vpop.f32.mrf.mxu0
      %v641 = vadd.f32 %v349, %v640
      %v642 = vpop.f32.mrf.mxu0
      %643 = vmatprep.mubr.bf16.mxu0 0
      %644 = vmatmul.mubr.bf16.gmra.mxu0 %v356
      %v645 = vpop.f32.mrf.mxu0
      %v646 = vadd.f32 %v349, %v645
      %v647 = vpop.f32.mrf.mxu0
      %v648 = vpop.f32.mrf.mxu0
      %v649 = vadd.f32 %v349, %v648
      %v650 = vpop.f32.mrf.mxu0
      %651 = vmatprep.mubr.bf16.mxu0 0
      %652 = vmatmul.mubr.bf16.gmra.mxu0 %v359
      %v653 = vpop.f32.mrf.mxu0
      %v654 = vadd.f32 %v349, %v653
      %v655 = vpop.f32.mrf.mxu0
      %v656 = vpop.f32.mrf.mxu0
      %v657 = vadd.f32 %v349, %v656
      %v658 = vpop.f32.mrf.mxu0
      %659 = vmatprep.mubr.bf16.mxu0 0
      %660 = vmatmul.mubr.bf16.gmra.mxu0 %v362
      %v661 = vpop.f32.mrf.mxu0
      %v662 = vadd.f32 %v349, %v661
      %v663 = vpop.f32.mrf.mxu0
      %v664 = vpop.f32.mrf.mxu0
      %v665 = vadd.f32 %v349, %v664
      %v666 = vpop.f32.mrf.mxu0
      %667 = vmatprep.mubr.bf16.mxu0 0
      %668 = vmatmul.mubr.bf16.gmra.mxu0 %v365
      %v669 = vpop.f32.mrf.mxu0
      %v670 = vadd.f32 %v349, %v669
      %v671 = vpop.f32.mrf.mxu0
      %v672 = vpop.f32.mrf.mxu0
      %v673 = vadd.f32 %v349, %v672
      %v674 = vpop.f32.mrf.mxu0
      %675 = vmatprep.mubr.bf16.mxu0 0
      %676 = vmatmul.mubr.bf16.gmra.mxu0 %v368
      %v677 = vpop.f32.mrf.mxu0
      %v678 = vadd.f32 %v349, %v677
      %v679 = vpop.f32.mrf.mxu0
      %v680 = vpop.f32.mrf.mxu0
      %v681 = vadd.f32 %v349, %v680
      %v682 = vpop.f32.mrf.mxu0
      %683 = vmatprep.mubr.bf16.mxu0 0
      %684 = vmatmul.mubr.bf16.gmra.mxu0 %v371
      %v685 = vpop.f32.mrf.mxu0
      %v686 = vadd.f32 %v349, %v685
      %v687 = vpop.f32.mrf.mxu0
      %v688 = vpop.f32.mrf.mxu0
      %v689 = vadd.f32 %v349, %v688
      %v690 = vpop.f32.mrf.mxu0
      %691 = vmatprep.mubr.bf16.mxu0 0
      %692 = vmatmul.mubr.bf16.gmra.mxu0 %v374
      %v693 = vpop.f32.mrf.mxu0
      %v694 = vadd.f32 %v349, %v693
      %v695 = vpop.f32.mrf.mxu0
      %v696 = vpop.f32.mrf.mxu0
      %v697 = vadd.f32 %v349, %v696
      %v698 = vpop.f32.mrf.mxu0
      %699 = vmatprep.mubr.bf16.mxu0 0
      %700 = vmatmul.mubr.bf16.gmra.mxu0 %v377
      %v701 = vpop.f32.mrf.mxu0
      %v702 = vadd.f32 %v349, %v701
      %v703 = vpop.f32.mrf.mxu0
      %v704 = vpop.f32.mrf.mxu0
      %v705 = vadd.f32 %v349, %v704
      %v706 = vpop.f32.mrf.mxu0
      %707 = vmatprep.mubr.bf16.mxu0 0
      %708 = vmatmul.mubr.bf16.gmra.mxu0 %v380
      %v709 = vpop.f32.mrf.mxu0
      %v710 = vadd.f32 %v349, %v709
      %v711 = vpop.f32.mrf.mxu0
      %v712 = vpop.f32.mrf.mxu0
      %v713 = vadd.f32 %v349, %v712
      %v714 = vpop.f32.mrf.mxu0
      %715 = vmatprep.mubr.bf16.mxu0 0
      %716 = vmatmul.mubr.bf16.gmra.mxu0 %v383
      %v717 = vpop.f32.mrf.mxu0
      %v718 = vadd.f32 %v349, %v717
      %v719 = vpop.f32.mrf.mxu0
      %v720 = vpop.f32.mrf.mxu0
      %v721 = vadd.f32 %v349, %v720
      %v722 = vpop.f32.mrf.mxu0
      %723 = vmatprep.mubr.bf16.mxu0 0
      %724 = vmatmul.mubr.bf16.gmra.mxu0 %v386
      %v725 = vpop.f32.mrf.mxu0
      %v726 = vadd.f32 %v349, %v725
      %v727 = vpop.f32.mrf.mxu0
      %v728 = vpop.f32.mrf.mxu0
      %v729 = vadd.f32 %v349, %v728
      %v730 = vpop.f32.mrf.mxu0
      %731 = vmatprep.mubr.bf16.mxu0 0
      %732 = vmatmul.mubr.bf16.gmra.mxu0 %v389
      %v733 = vpop.f32.mrf.mxu0
      %v734 = vadd.f32 %v349, %v733
      %v735 = vpop.f32.mrf.mxu0
      %v736 = vpop.f32.mrf.mxu0
      %v737 = vadd.f32 %v349, %v736
      %v738 = vpop.f32.mrf.mxu0
      %739 = vmatprep.mubr.bf16.mxu0 0
      %740 = vmatmul.mubr.bf16.gmra.mxu0 %v392
      %v741 = vpop.f32.mrf.mxu0
      %v742 = vadd.f32 %v349, %v741
      %v743 = vpop.f32.mrf.mxu0
      %v744 = vpop.f32.mrf.mxu0
      %v745 = vadd.f32 %v349, %v744
      %v746 = vpop.f32.mrf.mxu0
      %747 = vmatprep.mubr.bf16.mxu0 0
      %748 = vmatmul.mubr.bf16.gmra.mxu0 %v395
      %v749 = vpop.f32.mrf.mxu0
      %v750 = vadd.f32 %v349, %v749
      %v751 = vpop.f32.mrf.mxu0
      %v752 = vpop.f32.mrf.mxu0
      %v753 = vadd.f32 %v349, %v752
      %v754 = vpop.f32.mrf.mxu0
      %755 = vmatprep.mubr.bf16.mxu0 0
      %756 = vmatmul.mubr.bf16.gmra.mxu0 %v398
      %v757 = vpop.f32.mrf.mxu0
      %v758 = vadd.f32 %v349, %v757
      %v759 = vpop.f32.mrf.mxu0
      %v760 = vpop.f32.mrf.mxu0
      %v761 = vadd.f32 %v349, %v760
      %v762 = vpop.f32.mrf.mxu0
      %763 = vdwg.mxu0
      %s764 = scalar_lea.vmem %s256, 16
      %765 = vst.msk [vmem:[%s764] sm:$0xff] %vm565, %v638
      %766 = vst.msk [vmem:[%s764 + $0x8] sm:$0xff] %vm565, %v641
      %767 = vst.msk [vmem:[%s764 + $0x20] sm:$0xff] %vm565, %v646
      %768 = vst.msk [vmem:[%s764 + $0x28] sm:$0xff] %vm565, %v649
      %769 = vst.msk [vmem:[%s764 + $0x40] sm:$0xff] %vm565, %v654
      %770 = vst.msk [vmem:[%s764 + $0x48] sm:$0xff] %vm565, %v657
      %771 = vst.msk [vmem:[%s764 + $0x60] sm:$0xff] %vm565, %v662
      %772 = vst.msk [vmem:[%s764 + $0x68] sm:$0xff] %vm565, %v665
      %773 = vst.msk [vmem:[%s764 + $0x80] sm:$0xff] %vm565, %v670
      %774 = vst.msk [vmem:[%s764 + $0x88] sm:$0xff] %vm565, %v673
      %775 = vst.msk [vmem:[%s764 + $0xa0] sm:$0xff] %vm565, %v678
      %776 = vst.msk [vmem:[%s764 + $0xa8] sm:$0xff] %vm565, %v681
      %777 = vst.msk [vmem:[%s764 + $0xc0] sm:$0xff] %vm565, %v686
      %778 = vst.msk [vmem:[%s764 + $0xc8] sm:$0xff] %vm565, %v689
      %779 = vst.msk [vmem:[%s764 + $0xe0] sm:$0xff] %vm565, %v694
      %780 = vst.msk [vmem:[%s764 + $0xe8] sm:$0xff] %vm565, %v697
      %781 = vst.msk [vmem:[%s764 + $0x100] sm:$0xff] %vm565, %v702
      %782 = vst.msk [vmem:[%s764 + $0x108] sm:$0xff] %vm565, %v705
      %783 = vst.msk [vmem:[%s764 + $0x120] sm:$0xff] %vm565, %v710
      %784 = vst.msk [vmem:[%s764 + $0x128] sm:$0xff] %vm565, %v713
      %785 = vst.msk [vmem:[%s764 + $0x140] sm:$0xff] %vm565, %v718
      %786 = vst.msk [vmem:[%s764 + $0x148] sm:$0xff] %vm565, %v721
      %787 = vst.msk [vmem:[%s764 + $0x160] sm:$0xff] %vm565, %v726
      %788 = vst.msk [vmem:[%s764 + $0x168] sm:$0xff] %vm565, %v729
      %789 = vst.msk [vmem:[%s764 + $0x180] sm:$0xff] %vm565, %v734
      %790 = vst.msk [vmem:[%s764 + $0x188] sm:$0xff] %vm565, %v737
      %791 = vst.msk [vmem:[%s764 + $0x1a0] sm:$0xff] %vm565, %v742
      %792 = vst.msk [vmem:[%s764 + $0x1a8] sm:$0xff] %vm565, %v745
      %793 = vst.msk [vmem:[%s764 + $0x1c0] sm:$0xff] %vm565, %v750
      %794 = vst.msk [vmem:[%s764 + $0x1c8] sm:$0xff] %vm565, %v753
      %795 = vst.msk [vmem:[%s764 + $0x1e0] sm:$0xff] %vm565, %v758
      %796 = vst.msk [vmem:[%s764 + $0x1e8] sm:$0xff] %vm565, %v761
      %s797 = smul.u32 16, %s20
      %p798 = scmp.lt.s32.totalorder %s19, 1
      %s799 = scalar_select %p798, %s19, 1
      %p800 = scmp.lt.s32.totalorder %s797, 15
      %s801 = scalar_select %p800, %s797, 15
      %p802 = scmp.lt.s32.totalorder %s21, 0
      %s803 = scalar_select %p802, %s21, 0
      %s804 = smul.addr %s801, 4
      %s805 = sadd.s32 %s803, %s804
      %s806 = smul.addr %s799, 64
      %s807 = sadd.s32 %s805, %s806
      %s808 = smul.addr %s807, 8
      %s809 = scalar_lea.vmem %s3, %s808
      // Predicated region
      $region33: #{_lambda_.1} parent=31 // pred_check
        %p810 = pneg %p135
      $region34: #{_lambda_.1} parent=31 // pred_check_branch
        %812 = sbr.rel (%p810) target = $region36
      $region35: #{_lambda_.1} parent=31 // pred_region
        %s813 = smul.u32 16, %s20
      $region36: #{_lambda_.1} parent=31 // pred_fallthru
        _
    $region32: #{_lambda_.1} parent=5 // pred_fallthru
      _
    %p814 = scmp.le.s32.totalorder 2, %s9
    // Predicated region
    $region37: #{_lambda_.1} parent=5 // pred_check
      %p815 = pneg %p814
    $region38: #{_lambda_.1} parent=5 // pred_check_branch
      %817 = sbr.rel (%p815) target = $region40
    $region39: #{_lambda_.1} parent=5 // pred_region
      %s818 = ssub.s32 %s9, 2
      // Predicated region
      $region41: #{_lambda_.1} parent=39 // pred_check
        %p819 = pneg %p141
      $region42: #{_lambda_.1} parent=39 // pred_check_branch
        %821 = sbr.rel (%p819) target = $region44
      $region43: #{_lambda_.1} parent=39 // pred_region
        %s822 = smul.u32 16, %s23
        %p823 = scmp.lt.s32.totalorder %s22, 1
        %s824 = scalar_select %p823, %s22, 1
        %p825 = scmp.lt.s32.totalorder %s822, 15
        %s826 = scalar_select %p825, %s822, 15
        %p827 = scmp.lt.s32.totalorder %s24, 0
        %s828 = scalar_select %p827, %s24, 0
        %s829 = smul.addr %s826, 4
        %s830 = sadd.s32 %s828, %s829
        %s831 = smul.addr %s824, 64
        %s832 = sadd.s32 %s830, %s831
        %s833 = smul.addr %s832, 8
        %s834 = scalar_lea.vmem %s3, %s833
      $region44: #{_lambda_.1} parent=39 // pred_fallthru
        _
    $region40: #{_lambda_.1} parent=5 // pred_fallthru
      _
  $region6: #{_lambda_.1} parent=0 // loop_footer
    %s13 = sadd.s32 1, %s9
  $region7: #{_lambda_.1} parent=0 // loop_footer_branch
    %8 = sbr.rel target = $region3
  $region8: #{_lambda_.1} parent=0 // loop_exit
    _

</llo_original>
